<compile_context>
chip_gen: v7x
topology: tpu7x:2x2x1
jax: 0.10.0
libtpu: 0.0.40
codegen_flags: <defaults>
</compile_context>

<pallas_src>
import jax
import jax.numpy as jnp
from jax.experimental import pallas as pl
from jax.experimental.pallas import tpu as pltpu

_LANE = 128
_TILE_BUDGET_BYTES = 32 * 1024 * 1024   # live per-step VMEM footprint target
_VMEM_LIMIT_BYTES = 48 * 1024 * 1024    # scoped limit: fits v7x's 64 MiB


def _attn_kernel(x_ref, w_ref, b_ref, out_ref, att_ref):
    # x_ref   : (Bn, C, T)  tile of the feature map (C on sublanes, T on lanes)
    # w_ref   : (1, C, 1)   1x1 conv weight (in_channels -> 1)
    # b_ref   : (1, 1)      conv bias, in SMEM
    # out_ref : (Bn, C, T)  gated features
    # att_ref : (Bn, 1, T)  attention map (lane-dense)
    x = x_ref[...]                                   # native dtype
    w = w_ref[...].astype(x.dtype)                   # (1, C, 1)
    b = b_ref[0, 0]                                  # scalar from SMEM (f32)

    # 1x1 conv == per-pixel channel reduction: VPU mul + sublane (XLU) sum,
    # accumulated in f32 without upcasting the whole (Bn, C, T) tile first.
    logits = jnp.sum(x * w, axis=1, keepdims=True, dtype=jnp.float32) + b
    att = jax.nn.sigmoid(logits)                     # (Bn, 1, T), f32

    att_ref[...] = att.astype(att_ref.dtype)
    # Gate in the input's native dtype (for bf16 inputs this deviates from a
    # strict f32 torch conv->sigmoid->mul chain at ~bf16 epsilon; f32 is exact).
    out_ref[...] = (x * att.astype(x.dtype)).astype(out_ref.dtype)


def _round_up(v, m):
    return ((v + m - 1) // m) * m


def _pick_tiles(n, c, hw, in_itemsize, out_itemsize,
                budget_bytes=_TILE_BUDGET_BYTES):
    """Choose (Bn, T): batch rows and spatial lanes per grid step."""
    c_pad = _round_up(c, 8)   # sublane padding (conservative, 32-bit tiling)

    def per_lane_bytes(bn):
        io = bn * c_pad * 2 * (in_itemsize + out_itemsize)   # 2x in + 2x out
        att = bn * (2 * out_itemsize + 8)                     # 2x att + f32 tmp
        tmp = bn * c_pad * 4                                  # f32 x*w product
        return io + att + tmp

    # Fill vreg sublanes: 8 rows for 32-bit data, 16 for bf16, 32 for int8.
    rows_target = 8 * max(1, 4 // in_itemsize)
    bn = max(1, min(n, -(-rows_target // c)))

    # Spatial tile: largest multiple of 128 under budget, clamped to HW.
    if hw < _LANE:
        t = hw                                       # full-dim block (legal)
    else:
        cap = (budget_bytes // per_lane_bytes(bn)) // _LANE * _LANE
        t = max(_LANE, min(cap, _round_up(hw, _LANE)))

    # Grow Bn so each step moves a decent chunk (amortizes the ~0.35 us/step
    # grid overhead; matters most for small C / small HW), within budget.
    while (bn < n
           and bn * c * t * (in_itemsize + out_itemsize) < (512 << 10)
           and per_lane_bytes(bn + 1) * max(t, _LANE) <= budget_bytes):
        bn += 1

    # Guarantee >= 2 grid steps when possible so both v7x TensorCores (and the
    # double-buffered DMA pipeline) get independent work.
    if pl.cdiv(n, bn) * pl.cdiv(hw, t) < 2:
        if hw >= 2 * _LANE:
            t_split = max(_LANE, _round_up(pl.cdiv(hw, 2), _LANE))
            if t_split < hw:
                t = t_split
        elif bn > 1:
            bn = pl.cdiv(bn, 2)
    return bn, t


@jax.jit
def attention_module(x_nchw, weight, bias):
    """Pallas implementation of AttentionModule.forward.

    Args:
      x_nchw : (N, C, H, W)
      weight : (1, C, 1, 1)  -- nn.Conv2d(in_channels, 1, 1).weight
      bias   : (1,)          -- nn.Conv2d(...).bias
    Returns:
      (x * attention, attention) in NCHW, matching PyTorch.
    """
    N, C, H, W = x_nchw.shape
    HW = H * W
    out_dtype = x_nchw.dtype

    bn, t = _pick_tiles(N, C, HW,
                        jnp.dtype(x_nchw.dtype).itemsize,
                        jnp.dtype(out_dtype).itemsize)
    grid = (pl.cdiv(N, bn), pl.cdiv(HW, t))

    # Metadata-only reshapes (NCHW is contiguous with HW last): no HBM traffic.
    x_flat = x_nchw.reshape(N, C, HW)
    w3d = weight.reshape(1, C, 1)
    b2d = bias.reshape(1, 1).astype(jnp.float32)

    out_flat, att_flat = pl.pallas_call(
        _attn_kernel,
        out_shape=(
            jax.ShapeDtypeStruct((N, C, HW), out_dtype),
            jax.ShapeDtypeStruct((N, 1, HW), out_dtype),
        ),
        grid_spec=pltpu.PrefetchScalarGridSpec(
            num_scalar_prefetch=0,
            grid=grid,
            in_specs=[
                pl.BlockSpec((bn, C, t), lambda n, s: (n, 0, s)),
                pl.BlockSpec((1, C, 1), lambda n, s: (0, 0, 0)),
                pl.BlockSpec(memory_space=pltpu.MemorySpace.SMEM),
            ],
            out_specs=[
                pl.BlockSpec((bn, C, t), lambda n, s: (n, 0, s)),
                pl.BlockSpec((bn, 1, t), lambda n, s: (n, 0, s)),
            ],
        ),
        compiler_params=pltpu.CompilerParams(
            dimension_semantics=("parallel", "parallel"),
            vmem_limit_bytes=_VMEM_LIMIT_BYTES,
        ),
    )(x_flat, w3d, b2d)

    out = out_flat.reshape(N, C, H, W)
    att = att_flat.reshape(N, 1, H, W)
    return out, att


if __name__ == "__main__":
    key = jax.random.PRNGKey(0)
    k_x, k_w, k_b = jax.random.split(key, 3)

    N, C, H, W = 2, 4, 16, 16
    x = jax.random.normal(k_x, (N, C, H, W), dtype=jnp.float32)

    # Deterministic parameter init (PyTorch-style uniform(-1/sqrt(C), 1/sqrt(C))).
    bound = 1.0 / jnp.sqrt(jnp.float32(C))
    weight = jax.random.uniform(k_w, (1, C, 1, 1), jnp.float32, -bound, bound)
    bias = jax.random.uniform(k_b, (1,), jnp.float32, -bound, bound)

    out, att = attention_module(x, weight, bias)
    jax.block_until_ready((out, att))

    # Pure-JAX reference (elementwise mul + channel sum, same math as kernel).
    logits_ref = jnp.sum(x * weight.reshape(1, C, 1, 1),
                         axis=1, keepdims=True) + bias[0]
    att_ref = jax.nn.sigmoid(logits_ref)            # (N, 1, H, W)
    out_ref = x * att_ref

    assert out.shape == (N, C, H, W) and att.shape == (N, 1, H, W)
    assert jnp.allclose(att, att_ref, atol=2e-5, rtol=1e-5)
    assert jnp.allclose(out, out_ref, atol=2e-5, rtol=1e-5)

    print("KERNEL_OK")
</pallas_src>

<mosaic_0001>
module attributes {stable_mosaic.version = 11 : i64} {
  func.func @_attn_kernel(%arg0: i32, %arg1: i32, %arg2: memref<2x4x128xf32, #tpu.memory_space<vmem>>, %arg3: memref<1x4x1xf32, #tpu.memory_space<vmem>>, %arg4: memref<1x1xf32, #tpu.memory_space<smem>>, %arg5: memref<2x4x128xf32, #tpu.memory_space<vmem>>, %arg6: memref<2x1x128xf32, #tpu.memory_space<vmem>>) attributes {dimension_semantics = [#tpu.dimension_semantics<parallel>, #tpu.dimension_semantics<parallel>], iteration_bounds = array<i64: 1, 2>, scalar_prefetch = 0 : i64, scratch_operands = 0 : i64, tpu.core_type = #tpu.core_type<tc>, window_params = [{transform_indices = @transform_0, window_bounds = array<i64: 2, 4, 128>}, {pipeline_mode = #tpu.pipeline_mode<synchronous>, transform_indices = @transform_1, window_bounds = array<i64: 1, 4, 1>}, {transform_indices = @transform_2, window_bounds = array<i64: 1, 1>}, {transform_indices = @transform_3, window_bounds = array<i64: 2, 4, 128>}, {transform_indices = @transform_4, window_bounds = array<i64: 2, 1, 128>}]} {
    %c0 = arith.constant 0 : index
    %c0_0 = arith.constant 0 : index
    %c0_1 = arith.constant 0 : index
    %0 = vector.load %arg2[%c0, %c0_0, %c0_1] : memref<2x4x128xf32, #tpu.memory_space<vmem>>, vector<2x4x128xf32>
    %c0_2 = arith.constant 0 : index
    %c0_3 = arith.constant 0 : index
    %c0_4 = arith.constant 0 : index
    %1 = vector.load %arg3[%c0_2, %c0_3, %c0_4] : memref<1x4x1xf32, #tpu.memory_space<vmem>>, vector<1x4x1xf32>
    %c0_5 = arith.constant 0 : index
    %c0_6 = arith.constant 0 : index
    %2 = memref.load %arg4[%c0_5, %c0_6] : memref<1x1xf32, #tpu.memory_space<smem>>
    %3 = vector.broadcast %1 : vector<1x4x1xf32> to vector<2x4x128xf32>
    %4 = arith.mulf %0, %3 : vector<2x4x128xf32>
    %cst = arith.constant dense<0.000000e+00> : vector<2x128xf32>
    %5 = vector.multi_reduction <add>, %4, %cst [1] : vector<2x4x128xf32> to vector<2x128xf32>
    %6 = vector.shape_cast %5 : vector<2x128xf32> to vector<2x1x128xf32>
    %7 = vector.broadcast %2 : f32 to vector<2x1x128xf32>
    %8 = arith.addf %6, %7 : vector<2x1x128xf32>
    %9 = arith.negf %8 : vector<2x1x128xf32>
    %10 = math.exp %9 : vector<2x1x128xf32>
    %cst_7 = arith.constant 1.000000e+00 : f32
    %11 = vector.broadcast %cst_7 : f32 to vector<2x1x128xf32>
    %12 = arith.addf %11, %10 : vector<2x1x128xf32>
    %13 = arith.divf %11, %12 : vector<2x1x128xf32>
    %c0_8 = arith.constant 0 : index
    %c0_9 = arith.constant 0 : index
    %c0_10 = arith.constant 0 : index
    %14 = vector.load %arg6[%c0_8, %c0_9, %c0_10] : memref<2x1x128xf32, #tpu.memory_space<vmem>>, vector<2x1x128xf32>
    tpu.vector_store %arg6[%c0_8, %c0_9, %c0_10], %13 {strides = array<i32>} : memref<2x1x128xf32, #tpu.memory_space<vmem>>, vector<2x1x128xf32>,
    %15 = vector.broadcast %13 : vector<2x1x128xf32> to vector<2x4x128xf32>
    %16 = arith.mulf %0, %15 : vector<2x4x128xf32>
    %c0_11 = arith.constant 0 : index
    %c0_12 = arith.constant 0 : index
    %c0_13 = arith.constant 0 : index
    %17 = vector.load %arg5[%c0_11, %c0_12, %c0_13] : memref<2x4x128xf32, #tpu.memory_space<vmem>>, vector<2x4x128xf32>
    tpu.vector_store %arg5[%c0_11, %c0_12, %c0_13], %16 {strides = array<i32>} : memref<2x4x128xf32, #tpu.memory_space<vmem>>, vector<2x4x128xf32>,
    return
  }
  func.func @transform_0(%arg0: i32, %arg1: i32) -> (i32, i32, i32) {
    %c0_i32 = arith.constant 0 : i32
    %c0_i32_0 = arith.constant 0 : i32
    return %arg0, %c0_i32, %arg1 : i32, i32, i32
  }
  func.func @transform_1(%arg0: i32, %arg1: i32) -> (i32, i32, i32) {
    %c0_i32 = arith.constant 0 : i32
    %c0_i32_0 = arith.constant 0 : i32
    %c0_i32_1 = arith.constant 0 : i32
    %c0_i32_2 = arith.constant 0 : i32
    return %c0_i32, %c0_i32_0, %c0_i32_1 : i32, i32, i32
  }
  func.func @transform_2(%arg0: i32, %arg1: i32) -> (i32, i32) {
    %c0_i32 = arith.constant 0 : i32
    %c0_i32_0 = arith.constant 0 : i32
    %c0_i32_1 = arith.constant 0 : i32
    return %c0_i32, %c0_i32_0 : i32, i32
  }
  func.func @transform_3(%arg0: i32, %arg1: i32) -> (i32, i32, i32) {
    %c0_i32 = arith.constant 0 : i32
    %c0_i32_0 = arith.constant 0 : i32
    return %arg0, %c0_i32, %arg1 : i32, i32, i32
  }
  func.func @transform_4(%arg0: i32, %arg1: i32) -> (i32, i32, i32) {
    %c0_i32 = arith.constant 0 : i32
    %c0_i32_0 = arith.constant 0 : i32
    return %arg0, %c0_i32, %arg1 : i32, i32, i32
  }
}

</mosaic_0001>

<llo_original>
// kernel: attention_module.1
$region0: #{attention_module.1}
  #allocation0 [shape = 'u32[]', space=smem, size = 0x4, offset = 0x4, fixed_abs, tag = 'smem constant byte address 0x4 - core index']
  #allocation1 [shape = 'u32[144,128]{1,0:T(1,128)}', space=vmem, size = 0x12000, scoped, tag = 'internal scratch']
  #allocation2 [shape = 'f32[1,1]{1,0:T(1,128)S(6)}', space=smem, size = 0x200, scoped, tag = 'scoped memory for attention_module.1']
  %s0 = inlined_call_operand.vmem [shape: f32[2,4,256], index: 0, kind: input, shape index: {}]
  %s1 = inlined_call_operand.vmem [shape: f32[1,4,1], index: 1, kind: input, shape index: {}]
  %s2 = inlined_call_operand.<no memory space> [shape: f32[1,1], index: 2, kind: input, shape index: {}]
  %s3 = inlined_call_operand.vmem [shape: f32[2,4,256], index: 3, kind: output, shape index: {0}]
  %s4 = inlined_call_operand.vmem [shape: f32[2,1,256], index: 4, kind: output, shape index: {1}]
  %5 = xla_tuple %s3, %s4
  %s6 = sld [smem:[#allocation0]]
  $region161: #{attention_module.1} parent=0
    _
  %s8 = ssub.s32 1, %s6
  %s9 = scalar_select 0, %s8, %s6
  %10 = sst [smem:[#allocation2]] %s2
  $region1: #{attention_module.1} parent=0
    #allocation3 [shape = 'u8[8192]{0}', space=vmem, size = 0x2000, scoped, tag = 'input window, operand 0']
    #allocation4 [shape = 'u8[8192]{0}', space=vmem, size = 0x2000, scoped, tag = 'output window, operand 0']
    #allocation5 [shape = 'u8[2048]{0}', space=vmem, size = 0x800, scoped, tag = 'output window, operand 1']
    loop: start=0, step=1, limit=4
    $region2: #{attention_module.1} parent=1 // loop_pre_header
      _
    $region3: #{attention_module.1} parent=1 // loop_header
      %s12 = sphi 0, %s16
      %p13 = scmp.ge.s32.totalorder %s12, 4
      %s19 = sphi 0, %s31
      %s20 = sphi 0, %s27
      %s21 = sphi 0, %s19
      %s22 = sphi 0, %s20
      %s23 = sphi 0, %s21
      %s24 = sphi 0, %s22
      %s36 = sphi 0, %s38
      %s39 = sphi 0, %s36
      %s40 = sphi 0, %s39
      %s56 = sphi 0, %s40
      %s60 = sphi 0, %s60
      %s62 = sphi 0, %s60
      %s63 = sphi 0, %s62
      %s77 = sphi 0, %s63
      %s81 = sphi 0, %s81
      %s83 = sphi 0, %s81
      %s84 = sphi 0, %s83
      %s98 = sphi 0, %s84
      %s106 = sphi 0, %s108
      %s109 = sphi 0, %s106
      %s110 = sphi 0, %s109
      %s126 = sphi 0, %s110
      %s134 = sphi 0, %s136
      %s137 = sphi 0, %s134
      %s138 = sphi 0, %s137
      %s154 = sphi 0, %s138
    $region4: #{attention_module.1} parent=1 // loop_header_branch
      %15 = sbr.rel (%p13) target = $region8
    $region5: #{attention_module.1} parent=1 // loop_body
      %s17 = ssub.s32 %s12, 1
      %s18 = ssub.s32 %s12, 2
      %s25 = sadd.s32 1, %s20
      %p26 = scmp.ge.s32.totalorder %s25, 2
      %s27 = scalar_select %p26, 0, %s25
      %s28 = sadd.s32 1, %s19
      %s29 = scalar_select %p26, %s28, %s19
      %p30 = scmp.ge.s32.totalorder %s29, 1
      %s31 = scalar_select %p30, 0, %s29
      %s32 = ssub.s32 %s19, %s31
      %s33 = ssub.s32 %s20, %s27
      %s34 = sor.u32 %s32, %s33
      %p35 = scmp.eq.s32.totalorder %s34, 0
      %s37 = sadd.s32 %s36, 1
      %s38 = scalar_select %p35, %s36, %s37
      %p41 = pneg %p35
      %p42 = scmp.eq.s32.totalorder %s12, 1
      %p43 = por %p41, %p42
      %p44 = scmp.ne.s32.totalorder %s36, %s39
      %p45 = scmp.eq.s32.totalorder %s12, 0
      %p46 = por %p44, %p45
      %p47 = scmp.ne.s32.totalorder %s36, %s39
      %p48 = scmp.eq.s32.totalorder %s17, 1
      %p49 = por %p47, %p48
      %p50 = scmp.ne.s32.totalorder %s39, %s40
      %p51 = scmp.eq.s32.totalorder %s17, 0
      %p52 = por %p50, %p51
      %p53 = scmp.ne.s32.totalorder %s39, %s40
      %p54 = scmp.eq.s32.totalorder %s18, 1
      %p55 = por %p53, %p54
      %p57 = scmp.ne.s32.totalorder %s40, %s56
      %p58 = scmp.eq.s32.totalorder %s18, 0
      %p59 = por %p57, %p58
      %s61 = sadd.s32 %s60, 1
      %p64 = scmp.eq.s32.totalorder %s12, 1
      %p65 = scmp.ne.s32.totalorder %s60, %s62
      %p66 = scmp.eq.s32.totalorder %s12, 0
      %p67 = por %p65, %p66
      %p68 = scmp.ne.s32.totalorder %s60, %s62
      %p69 = scmp.eq.s32.totalorder %s17, 1
      %p70 = por %p68, %p69
      %p71 = scmp.ne.s32.totalorder %s62, %s63
      %p72 = scmp.eq.s32.totalorder %s17, 0
      %p73 = por %p71, %p72
      %p74 = scmp.ne.s32.totalorder %s62, %s63
      %p75 = scmp.eq.s32.totalorder %s18, 1
      %p76 = por %p74, %p75
      %p78 = scmp.ne.s32.totalorder %s63, %s77
      %p79 = scmp.eq.s32.totalorder %s18, 0
      %p80 = por %p78, %p79
      %s82 = sadd.s32 %s81, 1
      %p85 = scmp.eq.s32.totalorder %s12, 1
      %p86 = scmp.ne.s32.totalorder %s81, %s83
      %p87 = scmp.eq.s32.totalorder %s12, 0
      %p88 = por %p86, %p87
      %p89 = scmp.ne.s32.totalorder %s81, %s83
      %p90 = scmp.eq.s32.totalorder %s17, 1
      %p91 = por %p89, %p90
      %p92 = scmp.ne.s32.totalorder %s83, %s84
      %p93 = scmp.eq.s32.totalorder %s17, 0
      %p94 = por %p92, %p93
      %p95 = scmp.ne.s32.totalorder %s83, %s84
      %p96 = scmp.eq.s32.totalorder %s18, 1
      %p97 = por %p95, %p96
      %p99 = scmp.ne.s32.totalorder %s84, %s98
      %p100 = scmp.eq.s32.totalorder %s18, 0
      %p101 = por %p99, %p100
      %s102 = ssub.s32 %s19, %s31
      %s103 = ssub.s32 %s20, %s27
      %s104 = sor.u32 %s102, %s103
      %p105 = scmp.eq.s32.totalorder %s104, 0
      %s107 = sadd.s32 %s106, 1
      %s108 = scalar_select %p105, %s106, %s107
      %p111 = pneg %p105
      %p112 = scmp.eq.s32.totalorder %s12, 1
      %p113 = por %p111, %p112
      %p114 = scmp.ne.s32.totalorder %s106, %s109
      %p115 = scmp.eq.s32.totalorder %s12, 0
      %p116 = por %p114, %p115
      %p117 = scmp.ne.s32.totalorder %s106, %s109
      %p118 = scmp.eq.s32.totalorder %s17, 1
      %p119 = por %p117, %p118
      %p120 = scmp.ne.s32.totalorder %s109, %s110
      %p121 = scmp.eq.s32.totalorder %s17, 0
      %p122 = por %p120, %p121
      %p123 = scmp.ne.s32.totalorder %s109, %s110
      %p124 = scmp.eq.s32.totalorder %s18, 1
      %p125 = por %p123, %p124
      %p127 = scmp.ne.s32.totalorder %s110, %s126
      %p128 = scmp.eq.s32.totalorder %s18, 0
      %p129 = por %p127, %p128
      %s130 = ssub.s32 %s19, %s31
      %s131 = ssub.s32 %s20, %s27
      %s132 = sor.u32 %s130, %s131
      %p133 = scmp.eq.s32.totalorder %s132, 0
      %s135 = sadd.s32 %s134, 1
      %s136 = scalar_select %p133, %s134, %s135
      %p139 = pneg %p133
      %p140 = scmp.eq.s32.totalorder %s12, 1
      %p141 = por %p139, %p140
      %p142 = scmp.ne.s32.totalorder %s134, %s137
      %p143 = scmp.eq.s32.totalorder %s12, 0
      %p144 = por %p142, %p143
      %p145 = scmp.ne.s32.totalorder %s134, %s137
      %p146 = scmp.eq.s32.totalorder %s17, 1
      %p147 = por %p145, %p146
      %p148 = scmp.ne.s32.totalorder %s137, %s138
      %p149 = scmp.eq.s32.totalorder %s17, 0
      %p150 = por %p148, %p149
      %p151 = scmp.ne.s32.totalorder %s137, %s138
      %p152 = scmp.eq.s32.totalorder %s18, 1
      %p153 = por %p151, %p152
      %p155 = scmp.ne.s32.totalorder %s138, %s154
      %p156 = scmp.eq.s32.totalorder %s18, 0
      %p157 = por %p155, %p156
      %p158 = scmp.le.s32.totalorder 1, %s12
      %p159 = scmp.lt.s32.totalorder %s12, 3
      %p160 = pnand %p158, %p159
      %p161 = pneg %p160
      // Predicated region
      $region9: #{attention_module.1} parent=5 // pred_check
        _
      $region10: #{attention_module.1} parent=5 // pred_check_branch
        %163 = sbr.rel (%p160) target = $region12
      $region11: #{attention_module.1} parent=5 // pred_region
        %s164 = ssub.s32 %s12, 1
        // Predicated region
        $region13: #{attention_module.1} parent=11 // pred_check
          %p165 = pneg %p73
        $region14: #{attention_module.1} parent=11 // pred_check_branch
          %167 = sbr.rel (%p165) target = $region16
        $region15: #{attention_module.1} parent=11 // pred_region
          _
        $region16: #{attention_module.1} parent=11 // pred_fallthru
          _
        // Predicated region
        $region17: #{attention_module.1} parent=11 // pred_check
          %p168 = pneg %p94
        $region18: #{attention_module.1} parent=11 // pred_check_branch
          %170 = sbr.rel (%p168) target = $region20
        $region19: #{attention_module.1} parent=11 // pred_region
          _
        $region20: #{attention_module.1} parent=11 // pred_fallthru
          _
      $region12: #{attention_module.1} parent=5 // pred_fallthru
        _
      %p171 = scmp.lt.s32.totalorder %s12, 2
      // Predicated region
      $region21: #{attention_module.1} parent=5 // pred_check
        %p172 = pneg %p171
      $region22: #{attention_module.1} parent=5 // pred_check_branch
        %174 = sbr.rel (%p172) target = $region24
      $region23: #{attention_module.1} parent=5 // pred_region
        // Predicated region
        $region25: #{attention_module.1} parent=23 // pred_check
          %p175 = pneg %p46
        $region26: #{attention_module.1} parent=23 // pred_check_branch
          %177 = sbr.rel (%p175) target = $region28
        $region27: #{attention_module.1} parent=23 // pred_region
          %s178 = sand.u32 %s36, 1
          %s179 = sand.u32 %s36, 1
          %s180 = smul.addr %s179, 8
          %s181 = scalar_lea.vmem [#allocation3], %s180
          %s182 = smul.u32 2, %s19
          %s183 = smul.addr %s182, 2
          %s184 = sadd.s32 %s20, %s183
          %s185 = smul.addr %s184, 4
          %s186 = scalar_lea.vmem %s0, %s185
          // Predicated region
          $region29: #{attention_module.1} parent=27 // pred_check
            _
          $region30: #{attention_module.1} parent=27 // pred_check_branch
            %188 = sbr.rel (0) target = $region32
          $region31: #{attention_module.1} parent=27 // pred_region
            // Predicated region
            $region33: #{attention_module.1} parent=31 // pred_check
              _
            $region34: #{attention_module.1} parent=31 // pred_check_branch
              %190 = sbr.rel target = $region36
            $region35: #{attention_module.1} parent=31 // pred_region
              // Predicated region
              $region48: #{attention_module.1} parent=35 // pred_check
                _
              $region49: #{attention_module.1} parent=35 // pred_check_branch
                %207 = sbr.rel (0) target = $region51
              $region50: #{attention_module.1} parent=35 // pred_region
                loop: start=0, step=1, limit=1
                $region52: #{attention_module.1} parent=50 // loop_pre_header
                  _
                $region53: #{attention_module.1} parent=50 // loop_header
                  %s209 = sphi 0, %s213
                  %p210 = scmp.ge.s32.totalorder %s209, 1
                  %s214 = sphi %s186, %s186
                  %s215 = sphi %s181, %s181
                $region54: #{attention_module.1} parent=50 // loop_header_branch
                  %212 = sbr.rel (%p210) target = $region58
                $region55: #{attention_module.1} parent=50 // loop_body
                  _
                $region56: #{attention_module.1} parent=50 // loop_footer
                  %s213 = sadd.s32 1, %s209
                $region57: #{attention_module.1} parent=50 // loop_footer_branch
                  %208 = sbr.rel target = $region53
                $region58: #{attention_module.1} parent=50 // loop_exit
                  _
                loop: start=0, step=1, limit=1
                $region59: #{attention_module.1} parent=50 // loop_pre_header
                  _
                $region60: #{attention_module.1} parent=50 // loop_header
                  %s218 = sphi 0, %s222
                  %p219 = scmp.ge.s32.totalorder %s218, 1
                  %s223 = sphi %s186, %s186
                  %s224 = sphi %s181, %s181
                $region61: #{attention_module.1} parent=50 // loop_header_branch
                  %221 = sbr.rel (%p219) target = $region65
                $region62: #{attention_module.1} parent=50 // loop_body
                  %v225 = vld [vmem:[%s223] sm:$0xf]
                  %226 = vst [vmem:[%s224] sm:$0xf] %v225
                  %v227 = vld [vmem:[%s223 + $0x8] sm:$0xf]
                  %228 = vst [vmem:[%s224 + $0x4] sm:$0xf] %v227
                $region63: #{attention_module.1} parent=50 // loop_footer
                  %s222 = sadd.s32 1, %s218
                $region64: #{attention_module.1} parent=50 // loop_footer_branch
                  %217 = sbr.rel target = $region60
                $region65: #{attention_module.1} parent=50 // loop_exit
                  _
              $region51: #{attention_module.1} parent=35 // pred_fallthru
                _
            $region36: #{attention_module.1} parent=31 // pred_fallthru
              _
            // Predicated region
            $region37: #{attention_module.1} parent=31 // pred_check
              _
            $region38: #{attention_module.1} parent=31 // pred_check_branch
              %192 = sbr.rel (0) target = $region40
            $region39: #{attention_module.1} parent=31 // pred_region
              loop: start=0, step=1, limit=1
              $region41: #{attention_module.1} parent=39 // loop_pre_header
                _
              $region42: #{attention_module.1} parent=39 // loop_header
                %s195 = sphi 0, %s199
                %p196 = scmp.ge.s32.totalorder %s195, 1
                %s200 = sphi %s186, %s186
                %s201 = sphi %s181, %s181
              $region43: #{attention_module.1} parent=39 // loop_header_branch
                %198 = sbr.rel (%p196) target = $region47
              $region44: #{attention_module.1} parent=39 // loop_body
                %v202 = vld [vmem:[%s200] sm:$0xf]
                %203 = vst [vmem:[%s201] sm:$0xf] %v202
                %v204 = vld [vmem:[%s200 + $0x8] sm:$0xf]
                %205 = vst [vmem:[%s201 + $0x4] sm:$0xf] %v204
              $region45: #{attention_module.1} parent=39 // loop_footer
                %s199 = sadd.s32 1, %s195
              $region46: #{attention_module.1} parent=39 // loop_footer_branch
                %194 = sbr.rel target = $region42
              $region47: #{attention_module.1} parent=39 // loop_exit
                _
            $region40: #{attention_module.1} parent=31 // pred_fallthru
              _
          $region32: #{attention_module.1} parent=27 // pred_fallthru
            _
          %229 = vnop
        $region28: #{attention_module.1} parent=23 // pred_fallthru
          _
      $region24: #{attention_module.1} parent=5 // pred_fallthru
        _
      %p230 = scmp.le.s32.totalorder 1, %s12
      %p231 = scmp.lt.s32.totalorder %s12, 3
      %p232 = pnand %p230, %p231
      %p233 = pneg %p232
      // Predicated region
      $region66: #{attention_module.1} parent=5 // pred_check
        _
      $region67: #{attention_module.1} parent=5 // pred_check_branch
        %235 = sbr.rel (%p232) target = $region69
      $region68: #{attention_module.1} parent=5 // pred_region
        %s236 = ssub.s32 %s12, 1
        %s237 = sand.u32 %s39, 1
        %s238 = sand.u32 %s39, 1
        %s239 = smul.addr %s238, 8
        %s240 = scalar_lea.vmem [#allocation3], %s239
        // Predicated region
        $region70: #{attention_module.1} parent=68 // pred_check
          %p241 = pneg %p52
        $region71: #{attention_module.1} parent=68 // pred_check_branch
          %243 = sbr.rel (%p241) target = $region73
        $region72: #{attention_module.1} parent=68 // pred_region
          _
        $region73: #{attention_module.1} parent=68 // pred_fallthru
          _
        %s244 = sand.u32 %s39, 1
        %s245 = sand.u32 %s39, 1
        %s246 = smul.addr %s245, 8
        %s247 = scalar_lea.vmem [#allocation3], %s246
        %p248 = pneg %p52
        %p249 = pneg %p49
        %p250 = pneg %p73
        %p251 = pneg %p70
        %p252 = pneg %p94
        %p253 = pneg %p91
        %p254 = pneg %p122
        %p255 = pneg %p119
        %s256 = sand.u32 %s109, 1
        %s257 = sand.u32 %s109, 1
        %s258 = smul.addr %s257, 8
        %s259 = scalar_lea.vmem [#allocation4], %s258
        %p260 = pneg %p150
        %p261 = pneg %p147
        %s262 = sand.u32 %s137, 1
        %s263 = sand.u32 %s137, 1
        %s264 = smul.addr %s263, 2
        %s265 = scalar_lea.vmem [#allocation5], %s264
        %s266 = smul.u32 2, %s21
        %s267 = smul.u32 2, %s21
        %s268 = smul.u32 2, %s21
        %v269 = vld [vmem:[%s240] sm:$0xf]
        %v270 = vld [vmem:[%s240 + $0x4] sm:$0xf]
        %v271 = vld [vmem:[%s1] sm:$0xf]
        %s272 = sld [smem:[#allocation2]]
        %274 = vset.pattern.permute.xlu0 0
        %275 = vperm.xlu0 %274, %v271
        %v276 = vpop.permute.xlu0 %275
        %v278 = vmul.f32 %v269, %v276
        %v279 = vmul.f32 %v270, %v276
        %vm280 = vcmask 1043456
        %v281 = vsel %vm280, %v278, 0.0
        %v282 = vrot.slane %v281, 4
        %v283 = vadd.f32 %v281, %v282
        %v284 = vrot.slane %v283, 2
        %v285 = vadd.f32 %v283, %v284
        %v286 = vrot.slane %v285, 1
        %v287 = vadd.f32 %v285, %v286
        %v288 = vsel %vm280, %v279, 0.0
        %v289 = vrot.slane %v288, 4
        %v290 = vadd.f32 %v288, %v289
        %v291 = vrot.slane %v290, 2
        %v292 = vadd.f32 %v290, %v291
        %v293 = vrot.slane %v292, 1
        %v294 = vadd.f32 %v292, %v293
        %v295 = vstv %s272
        %v296 = vadd.f32 %v287, %v295
        %v297 = vadd.f32 %v294, %v295
        %v298 = vxor.u32 %v296, 2147483648
        %v299 = vxor.u32 %v297, 2147483648
        %v300 = vmul.f32 %v298, 1.442695
        %v301 = vpow.pop %v300
        %v302 = vmul.f32 %v299, 1.442695
        %v303 = vpow.pop %v302
        %v304 = vadd.f32 %v301, 1.0
        %v305 = vadd.f32 %v303, 1.0
        %v306 = vrcp.pop %v304
        %v307 = vmul.f32 1.0, %v306
        %v308 = vrcp.pop %v305
        %v309 = vmul.f32 1.0, %v308
        %310 = vst [vmem:[%s265] sm:$0x1] %v307
        %311 = vst [vmem:[%s265 + $0x1] sm:$0x1] %v309
        %v312 = vmul.f32 %v269, %v307
        %v313 = vmul.f32 %v270, %v309
        %314 = vst [vmem:[%s259] sm:$0xf] %v312
        %315 = vst [vmem:[%s259 + $0x4] sm:$0xf] %v313
        %s316 = sand.u32 %s109, 1
        %s317 = sand.u32 %s109, 1
        %s318 = smul.addr %s317, 8
        %s319 = scalar_lea.vmem [#allocation4], %s318
        %s320 = sand.u32 %s137, 1
        %s321 = sand.u32 %s137, 1
        %s322 = smul.addr %s321, 2
        %s323 = scalar_lea.vmem [#allocation5], %s322
        // Predicated region
        $region74: #{attention_module.1} parent=68 // pred_check
          %p324 = pneg %p119
        $region75: #{attention_module.1} parent=68 // pred_check_branch
          %326 = sbr.rel (%p324) target = $region77
        $region76: #{attention_module.1} parent=68 // pred_region
          %s327 = smul.u32 2, %s21
          %s328 = smul.addr %s327, 2
          %s329 = sadd.s32 %s22, %s328
          %s330 = smul.addr %s329, 4
          %s331 = scalar_lea.vmem %s3, %s330
          // Predicated region
          $region78: #{attention_module.1} parent=76 // pred_check
            _
          $region79: #{attention_module.1} parent=76 // pred_check_branch
            %333 = sbr.rel (0) target = $region81
          $region80: #{attention_module.1} parent=76 // pred_region
            // Predicated region
            $region82: #{attention_module.1} parent=80 // pred_check
              _
            $region83: #{attention_module.1} parent=80 // pred_check_branch
              %335 = sbr.rel target = $region85
            $region84: #{attention_module.1} parent=80 // pred_region
              // Predicated region
              $region97: #{attention_module.1} parent=84 // pred_check
                _
              $region98: #{attention_module.1} parent=84 // pred_check_branch
                %352 = sbr.rel (0) target = $region100
              $region99: #{attention_module.1} parent=84 // pred_region
                loop: start=0, step=1, limit=1
                $region101: #{attention_module.1} parent=99 // loop_pre_header
                  _
                $region102: #{attention_module.1} parent=99 // loop_header
                  %s354 = sphi 0, %s358
                  %p355 = scmp.ge.s32.totalorder %s354, 1
                  %s359 = sphi %s319, %s319
                  %s360 = sphi %s331, %s331
                $region103: #{attention_module.1} parent=99 // loop_header_branch
                  %357 = sbr.rel (%p355) target = $region107
                $region104: #{attention_module.1} parent=99 // loop_body
                  _
                $region105: #{attention_module.1} parent=99 // loop_footer
                  %s358 = sadd.s32 1, %s354
                $region106: #{attention_module.1} parent=99 // loop_footer_branch
                  %353 = sbr.rel target = $region102
                $region107: #{attention_module.1} parent=99 // loop_exit
                  _
                loop: start=0, step=1, limit=1
                $region108: #{attention_module.1} parent=99 // loop_pre_header
                  _
                $region109: #{attention_module.1} parent=99 // loop_header
                  %s363 = sphi 0, %s367
                  %p364 = scmp.ge.s32.totalorder %s363, 1
                  %s368 = sphi %s319, %s319
                  %s369 = sphi %s331, %s331
                $region110: #{attention_module.1} parent=99 // loop_header_branch
                  %366 = sbr.rel (%p364) target = $region114
                $region111: #{attention_module.1} parent=99 // loop_body
                  %v370 = vld [vmem:[%s368] sm:$0xf]
                  %371 = vst [vmem:[%s369] sm:$0xf] %v370
                  %v372 = vld [vmem:[%s368 + $0x4] sm:$0xf]
                  %373 = vst [vmem:[%s369 + $0x8] sm:$0xf] %v372
                $region112: #{attention_module.1} parent=99 // loop_footer
                  %s367 = sadd.s32 1, %s363
                $region113: #{attention_module.1} parent=99 // loop_footer_branch
                  %362 = sbr.rel target = $region109
                $region114: #{attention_module.1} parent=99 // loop_exit
                  _
              $region100: #{attention_module.1} parent=84 // pred_fallthru
                _
            $region85: #{attention_module.1} parent=80 // pred_fallthru
              _
            // Predicated region
            $region86: #{attention_module.1} parent=80 // pred_check
              _
            $region87: #{attention_module.1} parent=80 // pred_check_branch
              %337 = sbr.rel (0) target = $region89
            $region88: #{attention_module.1} parent=80 // pred_region
              loop: start=0, step=1, limit=1
              $region90: #{attention_module.1} parent=88 // loop_pre_header
                _
              $region91: #{attention_module.1} parent=88 // loop_header
                %s340 = sphi 0, %s344
                %p341 = scmp.ge.s32.totalorder %s340, 1
                %s345 = sphi %s319, %s319
                %s346 = sphi %s331, %s331
              $region92: #{attention_module.1} parent=88 // loop_header_branch
                %343 = sbr.rel (%p341) target = $region96
              $region93: #{attention_module.1} parent=88 // loop_body
                %v347 = vld [vmem:[%s345] sm:$0xf]
                %348 = vst [vmem:[%s346] sm:$0xf] %v347
                %v349 = vld [vmem:[%s345 + $0x4] sm:$0xf]
                %350 = vst [vmem:[%s346 + $0x8] sm:$0xf] %v349
              $region94: #{attention_module.1} parent=88 // loop_footer
                %s344 = sadd.s32 1, %s340
              $region95: #{attention_module.1} parent=88 // loop_footer_branch
                %339 = sbr.rel target = $region91
              $region96: #{attention_module.1} parent=88 // loop_exit
                _
            $region89: #{attention_module.1} parent=80 // pred_fallthru
              _
          $region81: #{attention_module.1} parent=76 // pred_fallthru
            _
          %374 = vnop
        $region77: #{attention_module.1} parent=68 // pred_fallthru
          _
        // Predicated region
        $region115: #{attention_module.1} parent=68 // pred_check
          %p375 = pneg %p147
        $region116: #{attention_module.1} parent=68 // pred_check_branch
          %377 = sbr.rel (%p375) target = $region118
        $region117: #{attention_module.1} parent=68 // pred_region
          %s378 = smul.u32 2, %s21
          %s379 = smul.addr %s378, 2
          %s380 = sadd.s32 %s22, %s379
          %s381 = scalar_lea.vmem %s4, %s380
          // Predicated region
          $region119: #{attention_module.1} parent=117 // pred_check
            _
          $region120: #{attention_module.1} parent=117 // pred_check_branch
            %383 = sbr.rel (0) target = $region122
          $region121: #{attention_module.1} parent=117 // pred_region
            // Predicated region
            $region123: #{attention_module.1} parent=121 // pred_check
              _
            $region124: #{attention_module.1} parent=121 // pred_check_branch
              %385 = sbr.rel target = $region126
            $region125: #{attention_module.1} parent=121 // pred_region
              // Predicated region
              $region138: #{attention_module.1} parent=125 // pred_check
                _
              $region139: #{attention_module.1} parent=125 // pred_check_branch
                %402 = sbr.rel (0) target = $region141
              $region140: #{attention_module.1} parent=125 // pred_region
                loop: start=0, step=1, limit=1
                $region142: #{attention_module.1} parent=140 // loop_pre_header
                  _
                $region143: #{attention_module.1} parent=140 // loop_header
                  %s405 = sphi 0, %s409
                  %p406 = scmp.ge.s32.totalorder %s405, 1
                  %s410 = sphi %s323, %s323
                  %s411 = sphi %s381, %s381
                $region144: #{attention_module.1} parent=140 // loop_header_branch
                  %408 = sbr.rel (%p406) target = $region148
                $region145: #{attention_module.1} parent=140 // loop_body
                  %v412 = vld [vmem:[%s410] sm:$0x1]
                  %413 = vst [vmem:[%s411] sm:$0x1] %v412
                  %v414 = vld [vmem:[%s410 + $0x1] sm:$0x1]
                  %415 = vst [vmem:[%s411 + $0x2] sm:$0x1] %v414
                $region146: #{attention_module.1} parent=140 // loop_footer
                  %s409 = sadd.s32 1, %s405
                $region147: #{attention_module.1} parent=140 // loop_footer_branch
                  %404 = sbr.rel target = $region143
                $region148: #{attention_module.1} parent=140 // loop_exit
                  _
              $region141: #{attention_module.1} parent=125 // pred_fallthru
                _
            $region126: #{attention_module.1} parent=121 // pred_fallthru
              _
            // Predicated region
            $region127: #{attention_module.1} parent=121 // pred_check
              _
            $region128: #{attention_module.1} parent=121 // pred_check_branch
              %387 = sbr.rel (0) target = $region130
            $region129: #{attention_module.1} parent=121 // pred_region
              loop: start=0, step=1, limit=1
              $region131: #{attention_module.1} parent=129 // loop_pre_header
                _
              $region132: #{attention_module.1} parent=129 // loop_header
                %s390 = sphi 0, %s394
                %p391 = scmp.ge.s32.totalorder %s390, 1
                %s395 = sphi %s323, %s323
                %s396 = sphi %s381, %s381
              $region133: #{attention_module.1} parent=129 // loop_header_branch
                %393 = sbr.rel (%p391) target = $region137
              $region134: #{attention_module.1} parent=129 // loop_body
                %v397 = vld [vmem:[%s395] sm:$0x1]
                %398 = vst [vmem:[%s396] sm:$0x1] %v397
                %v399 = vld [vmem:[%s395 + $0x1] sm:$0x1]
                %400 = vst [vmem:[%s396 + $0x2] sm:$0x1] %v399
              $region135: #{attention_module.1} parent=129 // loop_footer
                %s394 = sadd.s32 1, %s390
              $region136: #{attention_module.1} parent=129 // loop_footer_branch
                %389 = sbr.rel target = $region132
              $region137: #{attention_module.1} parent=129 // loop_exit
                _
            $region130: #{attention_module.1} parent=121 // pred_fallthru
              _
          $region122: #{attention_module.1} parent=117 // pred_fallthru
            _
          %416 = vnop
        $region118: #{attention_module.1} parent=68 // pred_fallthru
          _
      $region69: #{attention_module.1} parent=5 // pred_fallthru
        _
      %p417 = scmp.le.s32.totalorder 2, %s12
      // Predicated region
      $region149: #{attention_module.1} parent=5 // pred_check
        %p418 = pneg %p417
      $region150: #{attention_module.1} parent=5 // pred_check_branch
        %420 = sbr.rel (%p418) target = $region152
      $region151: #{attention_module.1} parent=5 // pred_region
        %s421 = ssub.s32 %s12, 2
        // Predicated region
        $region153: #{attention_module.1} parent=151 // pred_check
          %p422 = pneg %p125
        $region154: #{attention_module.1} parent=151 // pred_check_branch
          %424 = sbr.rel (%p422) target = $region156
        $region155: #{attention_module.1} parent=151 // pred_region
          %s425 = sand.u32 %s110, 1
          %s426 = sand.u32 %s110, 1
          %s427 = smul.addr %s426, 8
          %s428 = scalar_lea.vmem [#allocation4], %s427
        $region156: #{attention_module.1} parent=151 // pred_fallthru
          _
        // Predicated region
        $region157: #{attention_module.1} parent=151 // pred_check
          %p429 = pneg %p153
        $region158: #{attention_module.1} parent=151 // pred_check_branch
          %431 = sbr.rel (%p429) target = $region160
        $region159: #{attention_module.1} parent=151 // pred_region
          %s432 = sand.u32 %s138, 1
          %s433 = sand.u32 %s138, 1
          %s434 = smul.addr %s433, 2
          %s435 = scalar_lea.vmem [#allocation5], %s434
        $region160: #{attention_module.1} parent=151 // pred_fallthru
          _
      $region152: #{attention_module.1} parent=5 // pred_fallthru
        _
    $region6: #{attention_module.1} parent=1 // loop_footer
      %s16 = sadd.s32 1, %s12
    $region7: #{attention_module.1} parent=1 // loop_footer_branch
      %11 = sbr.rel target = $region3
    $region8: #{attention_module.1} parent=1 // loop_exit
      _

</llo_original>
